<compile_context>
chip_gen: v7x
topology: tpu7x:2x2x1
jax: 0.10.0
libtpu: 0.0.40
codegen_flags: <defaults>
</compile_context>

<pallas_src>
import functools

import jax
import jax.numpy as jnp
from jax.experimental import pallas as pl
from jax.experimental.pallas import tpu as pltpu


def _pe_add_kernel(x_ref, pe_ref, o_ref):
    """x_ref / o_ref: (TR, H*W) blocks of the flattened (B*C, H*W) planes.
    pe_ref: (1, H*W) positional-encoding plane (f32), constant across grid steps.
    """
    o_ref[...] = (x_ref[...].astype(jnp.float32) + pe_ref[...]).astype(o_ref.dtype)


def _pick_row_tile(rows, hw, itemsize, target_bytes=4 * 1024 * 1024):
    """Largest row tile (multiple of 8, or the full row count) with block <= target_bytes."""
    per_row = max(1, hw * itemsize)
    tr = max(1, target_bytes // per_row)
    if tr >= rows:
        TR = rows
    else:
        TR = min(rows, max(8, (tr // 8) * 8))
    # Keep at least 2 grid steps when there is enough work (megacore / v7x's 2 TCs).
    if TR == rows and rows >= 16:
        half = (rows + 1) // 2
        TR = min(rows, max(8, ((half + 7) // 8) * 8))
    return TR


@functools.partial(jax.jit, static_argnames=("patch_size_H", "patch_size_W"))
def patch_embedding(x, conv_w, conv_b, *, patch_size_H, patch_size_W):
    """x: (B, 3, H, W) (NCHW, like PyTorch); conv_w: (1, 2, 1, 1); conv_b: (1,).

    Returns (B, T, 3, patch_size_H, patch_size_W) with
    T = (H // patch_size_H) * (W // patch_size_W), matching the PyTorch module.
    """
    B, C, H, W = x.shape
    pH, pW = patch_size_H, patch_size_W
    assert H % pH == 0 and W % pW == 0
    assert C == 3, "final .view(B, T, 3, pH, pW) in the reference requires C == 3"

    # --- positional encoding: pe = w0 * loc_w + w1 * loc_h + bias (computed once) ---
    w0 = conv_w[0, 0, 0, 0].astype(jnp.float32)
    w1 = conv_w[0, 1, 0, 0].astype(jnp.float32)
    bias = conv_b[0].astype(jnp.float32)
    loc_w = jnp.linspace(-1.0, 1.0, W, dtype=jnp.float32)     # torch.linspace(-1, 1, W)
    loc_h = jnp.linspace(-1.0, 1.0, H, dtype=jnp.float32)
    pe = (w0 * loc_w[None, :] + w1 * loc_h[:, None] + bias).reshape(1, H * W)

    # --- lane-dense 2D view: one row per (b, c) plane, columns = flattened H*W ---
    rows, hw = B * C, H * W
    x2d = x.reshape(rows, hw)                                  # contiguous reshape (free)
    TR = _pick_row_tile(rows, hw, x.dtype.itemsize)
    grid = (pl.cdiv(rows, TR),)

    y2d = pl.pallas_call(
        _pe_add_kernel,
        out_shape=jax.ShapeDtypeStruct((rows, hw), x.dtype),
        grid=grid,
        in_specs=[
            pl.BlockSpec((TR, hw), lambda r: (r, 0)),          # x rows, tiled
            pl.BlockSpec((1, hw), lambda r: (0, 0)),           # pe plane, constant
        ],
        out_specs=pl.BlockSpec((TR, hw), lambda r: (r, 0)),
        compiler_params=pltpu.CompilerParams(
            dimension_semantics=("parallel",),
        ),
    )(x2d, pe)

    # nn.Unfold(kernel=(pH,pW), stride=(pH,pW)) + Rearrange('b e H -> b H e')
    # + view(B, T, 3, pH, pW)  ==  a pure layout permutation (no compute), kept in-jit.
    # TODO(synk): fusing this permutation into the kernel's out_spec would save one extra
    # HBM round trip but requires a 5-D in-kernel relayout on sub-(8,128) patch dims.
    nH, nW = H // pH, W // pW
    out = y2d.reshape(B, C, nH, pH, nW, pW)
    out = out.transpose(0, 2, 4, 1, 3, 5)                      # (B, nH, nW, C, pH, pW)
    out = out.reshape(B, nH * nW, C, pH, pW)
    return out


def _reference(x, conv_w, conv_b, pH, pW):
    """Pure-JAX reference mirroring the PyTorch forward."""
    B, C, H, W = x.shape
    loc_w = jnp.broadcast_to(jnp.linspace(-1.0, 1.0, W)[None, :], (H, W))
    loc_h = jnp.broadcast_to(jnp.linspace(-1.0, 1.0, H)[:, None], (H, W))
    pe = conv_w[0, 0, 0, 0] * loc_w + conv_w[0, 1, 0, 0] * loc_h + conv_b[0]
    y = x + pe[None, None, :, :]
    nH, nW = H // pH, W // pW
    out = y.reshape(B, C, nH, pH, nW, pW).transpose(0, 2, 4, 1, 3, 5)
    return out.reshape(B, nH * nW, C, pH, pW)


if __name__ == "__main__":
    # Small shapes consistent with the module: C must be 3 (final view), square image.
    B, C, H, W = 2, 3, 16, 16
    pH, pW = 4, 4

    key = jax.random.PRNGKey(0)
    kx, kw, kb = jax.random.split(key, 3)
    x = jax.random.normal(kx, (B, C, H, W), dtype=jnp.float32)
    conv_w = jax.random.normal(kw, (1, 2, 1, 1), dtype=jnp.float32) * 0.1
    conv_b = jax.random.normal(kb, (1,), dtype=jnp.float32) * 0.1

    out = patch_embedding(x, conv_w, conv_b, patch_size_H=pH, patch_size_W=pW)
    out = jax.block_until_ready(out)

    ref = _reference(x, conv_w, conv_b, pH, pW)
    assert out.shape == (B, (H // pH) * (W // pW), 3, pH, pW), out.shape
    assert jnp.allclose(out, ref, atol=1e-5, rtol=1e-5), "mismatch vs reference"

    print("KERNEL_OK")
</pallas_src>

<mosaic_0001>
module attributes {stable_mosaic.version = 11 : i64} {
  func.func @_pe_add_kernel(%arg0: i32, %arg1: memref<6x256xf32, #tpu.memory_space<vmem>>, %arg2: memref<1x256xf32, #tpu.memory_space<vmem>>, %arg3: memref<6x256xf32, #tpu.memory_space<vmem>>) attributes {dimension_semantics = [#tpu.dimension_semantics<parallel>], iteration_bounds = array<i64: 1>, scalar_prefetch = 0 : i64, scratch_operands = 0 : i64, tpu.core_type = #tpu.core_type<tc>, window_params = [{transform_indices = @transform_0, window_bounds = array<i64: 6, 256>}, {pipeline_mode = #tpu.pipeline_mode<synchronous>, transform_indices = @transform_1, window_bounds = array<i64: 1, 256>}, {transform_indices = @transform_2, window_bounds = array<i64: 6, 256>}]} {
    %c0 = arith.constant 0 : index
    %c0_0 = arith.constant 0 : index
    %0 = vector.load %arg1[%c0, %c0_0] : memref<6x256xf32, #tpu.memory_space<vmem>>, vector<6x256xf32>
    %c0_1 = arith.constant 0 : index
    %c0_2 = arith.constant 0 : index
    %1 = vector.load %arg2[%c0_1, %c0_2] : memref<1x256xf32, #tpu.memory_space<vmem>>, vector<1x256xf32>
    %2 = vector.broadcast %1 : vector<1x256xf32> to vector<6x256xf32>
    %3 = arith.addf %0, %2 : vector<6x256xf32>
    %c0_3 = arith.constant 0 : index
    %c0_4 = arith.constant 0 : index
    %4 = vector.load %arg3[%c0_3, %c0_4] : memref<6x256xf32, #tpu.memory_space<vmem>>, vector<6x256xf32>
    tpu.vector_store %arg3[%c0_3, %c0_4], %3 {strides = array<i32>} : memref<6x256xf32, #tpu.memory_space<vmem>>, vector<6x256xf32>,
    return
  }
  func.func @transform_0(%arg0: i32) -> (i32, i32) {
    %c0_i32 = arith.constant 0 : i32
    %c0_i32_0 = arith.constant 0 : i32
    return %arg0, %c0_i32 : i32, i32
  }
  func.func @transform_1(%arg0: i32) -> (i32, i32) {
    %c0_i32 = arith.constant 0 : i32
    %c0_i32_0 = arith.constant 0 : i32
    %c0_i32_1 = arith.constant 0 : i32
    return %c0_i32, %c0_i32_0 : i32, i32
  }
  func.func @transform_2(%arg0: i32) -> (i32, i32) {
    %c0_i32 = arith.constant 0 : i32
    %c0_i32_0 = arith.constant 0 : i32
    return %arg0, %c0_i32 : i32, i32
  }
}

</mosaic_0001>

<llo_original>
// kernel: patch_embedding.1
$region0: #{patch_embedding.1}
  #allocation0 [shape = 'u32[]', space=smem, size = 0x4, offset = 0x4, fixed_abs, tag = 'smem constant byte address 0x4 - core index']
  #allocation1 [shape = 'u32[144,128]{1,0:T(1,128)}', space=vmem, size = 0x12000, scoped, tag = 'internal scratch']
  %s0 = inlined_call_operand.vmem [shape: f32[6,256], index: 0, kind: input, shape index: {}]
  %s1 = inlined_call_operand.vmem [shape: f32[1,256], index: 1, kind: input, shape index: {}]
  %s2 = inlined_call_operand.vmem [shape: f32[6,256], index: 2, kind: output, shape index: {}]
  %s3 = sld [smem:[#allocation0]]
  $region18: #{patch_embedding.1} parent=0
    _
  %s5 = ssub.s32 1, %s3
  %s6 = scalar_select 0, %s5, %s3
  // Predicated region
  $region2: #{patch_embedding.1} parent=0 // pred_check
    _
  $region3: #{patch_embedding.1} parent=0 // pred_check_branch
    %8 = sbr.rel (0) target = $region5
  $region4: #{patch_embedding.1} parent=0 // pred_region
    _
  $region5: #{patch_embedding.1} parent=0 // pred_fallthru
    _
  // Predicated region
  $region6: #{patch_embedding.1} parent=0 // pred_check
    _
  $region7: #{patch_embedding.1} parent=0 // pred_check_branch
    %10 = sbr.rel (0) target = $region9
  $region8: #{patch_embedding.1} parent=0 // pred_region
    _
  $region9: #{patch_embedding.1} parent=0 // pred_fallthru
    _
  %v11 = vld [vmem:[%s0] sm:$0x3f]
  %v12 = vld [vmem:[%s0 + $0x8] sm:$0x3f]
  %v13 = vld [vmem:[%s1] sm:$0x3]
  %v15 = vlaneseq
  %v16 = vshrl.u32 %v15, 7
  %v17 = vsub.s32 0, %v16
  %v18 = vrot.slane %v13, %v17
  %v19 = vlaneseq
  %v20 = vshrl.u32 %v19, 7
  %v21 = vsub.s32 1, %v20
  %v22 = vrot.slane %v13, %v21
  %v25 = vadd.f32 %v11, %v18
  %v26 = vadd.f32 %v12, %v22
  %27 = vst [vmem:[%s2] sm:$0x3f] %v25
  %28 = vst [vmem:[%s2 + $0x8] sm:$0x3f] %v26
  // Predicated region
  $region10: #{patch_embedding.1} parent=0 // pred_check
    _
  $region11: #{patch_embedding.1} parent=0 // pred_check_branch
    %30 = sbr.rel (0) target = $region13
  $region12: #{patch_embedding.1} parent=0 // pred_region
    _
  $region13: #{patch_embedding.1} parent=0 // pred_fallthru
    _
  // Predicated region
  $region14: #{patch_embedding.1} parent=0 // pred_check
    _
  $region15: #{patch_embedding.1} parent=0 // pred_check_branch
    %32 = sbr.rel (0) target = $region17
  $region16: #{patch_embedding.1} parent=0 // pred_region
    _
  $region17: #{patch_embedding.1} parent=0 // pred_fallthru
    _

</llo_original>
